<compile_context>
chip_gen: v7x
topology: tpu7x:2x2x1
jax: 0.10.0
libtpu: 0.0.40
codegen_flags: <defaults>
</compile_context>

<pallas_src>
import functools

import jax
import jax.numpy as jnp
from jax.experimental import pallas as pl
from jax.experimental.pallas import tpu as pltpu

CHANNEL = 64
REDUCTION = 16
HIDDEN = CHANNEL // REDUCTION   # 4
SEQ = 128                       # time axis (lane-dense: multiple of 128)


def channel_attention_kernel(x_ref, w1_ref, b1_ref, w2_ref, b2_ref, o_ref):
    # x: [TB, C, T]; w1: [C, H]; b1: [1, H]; w2: [H, C]; b2: [1, C]; o: [TB, T]
    x = x_ref[...]

    # Squeeze: adaptive_avg_pool1d(x, 1) == mean over the time (lane) axis.
    y = jnp.mean(x, axis=-1)                                        # [TB, C]

    # Excite: fc1 -> ReLU -> fc2 -> sigmoid (tiny MXU matmuls, f32 accumulation).
    h = jnp.dot(y, w1_ref[...], preferred_element_type=jnp.float32) + b1_ref[...]
    h = jnp.maximum(h, 0.0)                                         # [TB, H]
    logits = jnp.dot(h, w2_ref[...], preferred_element_type=jnp.float32) + b2_ref[...]
    # sigmoid = 1 / (1 + exp(-z)); exp + reciprocal run on the otherwise-idle EUP slot.
    gate = pl.reciprocal(1.0 + jnp.exp(-logits), approx=False)      # [TB, C]

    # Re-weight channels (VPU) and reduce over C (sublane reduce) -> lane-dense [TB, T].
    o_ref[...] = jnp.sum(x * gate[:, :, None], axis=1).astype(o_ref.dtype)


@functools.partial(jax.jit, static_argnames=("block_b",))
def channel_attention(x, w1_t, b1, w2_t, b2, *, block_b=8):
    """x: [B, C, T] f32; w1_t: [C, H]; b1: [1, H]; w2_t: [H, C]; b2: [1, C].
    Returns the channel-attention-weighted sum over C: [B, T] f32."""
    B, C, T = x.shape
    H = w1_t.shape[1]
    grid = (pl.cdiv(B, block_b),)

    flops = 2 * B * C * H + 2 * B * H * C + 3 * B * C * T   # fc1 + fc2 + mean/mul/sum
    bytes_accessed = 4 * (x.size + w1_t.size + b1.size + w2_t.size + b2.size + B * T)
    cost = pl.CostEstimate(flops=flops, transcendentals=B * C,
                           bytes_accessed=bytes_accessed)

    return pl.pallas_call(
        channel_attention_kernel,
        out_shape=jax.ShapeDtypeStruct((B, T), jnp.float32),
        grid_spec=pltpu.PrefetchScalarGridSpec(
            num_scalar_prefetch=0,
            grid=grid,
            in_specs=[
                # x is tiled over batch (Pallas double-buffers: prefetch i+1 while
                # computing i); weights/biases use constant index maps so they stay
                # resident in VMEM across all grid steps.
                pl.BlockSpec((block_b, C, T), lambda i: (i, 0, 0)),
                pl.BlockSpec((C, H), lambda i: (0, 0)),
                pl.BlockSpec((1, H), lambda i: (0, 0)),
                pl.BlockSpec((H, C), lambda i: (0, 0)),
                pl.BlockSpec((1, C), lambda i: (0, 0)),
            ],
            out_specs=pl.BlockSpec((block_b, T), lambda i: (i, 0)),
        ),
        compiler_params=pltpu.CompilerParams(
            # Batch tiles are independent -> shard grid across TensorCores on v7x.
            dimension_semantics=("parallel",),
            vmem_limit_bytes=32 * 1024 * 1024,
        ),
        cost_estimate=cost,
    )(x, w1_t, b1, w2_t, b2)


def init_params(key, channel=CHANNEL, reduction=REDUCTION):
    """Deterministic init matching nn.Linear shapes (uniform, 1/sqrt(fan_in) bounds).
    Weights are stored pre-transposed as [in, out]."""
    hidden = channel // reduction
    k1, k2, k3, k4 = jax.random.split(key, 4)
    bound1 = 1.0 / float(jnp.sqrt(channel))
    bound2 = 1.0 / float(jnp.sqrt(hidden))
    w1_t = jax.random.uniform(k1, (channel, hidden), jnp.float32, -bound1, bound1)
    b1 = jax.random.uniform(k2, (1, hidden), jnp.float32, -bound1, bound1)
    w2_t = jax.random.uniform(k3, (hidden, channel), jnp.float32, -bound2, bound2)
    b2 = jax.random.uniform(k4, (1, channel), jnp.float32, -bound2, bound2)
    return w1_t, b1, w2_t, b2


if __name__ == "__main__":
    key = jax.random.PRNGKey(0)
    kx, kp = jax.random.split(key)

    B, C, T = 16, CHANNEL, SEQ          # 16 batches -> 2 grid steps of 8 rows each
    x = jax.random.normal(kx, (B, C, T), jnp.float32)
    w1_t, b1, w2_t, b2 = init_params(kp)

    out = channel_attention(x, w1_t, b1, w2_t, b2, block_b=8)
    out = jax.block_until_ready(out)

    # Pure-JAX reference of the PyTorch forward.
    y_ref = jnp.mean(x, axis=-1)                        # adaptive_avg_pool1d(x, 1)
    h_ref = jnp.maximum(y_ref @ w1_t + b1, 0.0)         # fc1 + ReLU
    a_ref = jax.nn.sigmoid(h_ref @ w2_t + b2)           # fc2 + sigmoid
    ref = jnp.sum(x * a_ref[:, :, None], axis=1)        # (x * y).sum(dim=1)

    assert out.shape == (B, T)
    assert jnp.allclose(out, ref, atol=1e-4, rtol=1e-4), \
        float(jnp.max(jnp.abs(out - ref)))
    print("KERNEL_OK")
</pallas_src>

<mosaic_0001>
module attributes {stable_mosaic.version = 11 : i64} {
  func.func @channel_attention_kernel(%arg0: i32, %arg1: memref<8x64x128xf32, #tpu.memory_space<vmem>>, %arg2: memref<64x4xf32, #tpu.memory_space<vmem>>, %arg3: memref<1x4xf32, #tpu.memory_space<vmem>>, %arg4: memref<4x64xf32, #tpu.memory_space<vmem>>, %arg5: memref<1x64xf32, #tpu.memory_space<vmem>>, %arg6: memref<8x128xf32, #tpu.memory_space<vmem>>) attributes {dimension_semantics = [#tpu.dimension_semantics<parallel>], iteration_bounds = array<i64: 2>, scalar_prefetch = 0 : i64, scratch_operands = 0 : i64, tpu.core_type = #tpu.core_type<tc>, window_params = [{transform_indices = @transform_0, window_bounds = array<i64: 8, 64, 128>}, {pipeline_mode = #tpu.pipeline_mode<synchronous>, transform_indices = @transform_1, window_bounds = array<i64: 64, 4>}, {pipeline_mode = #tpu.pipeline_mode<synchronous>, transform_indices = @transform_2, window_bounds = array<i64: 1, 4>}, {pipeline_mode = #tpu.pipeline_mode<synchronous>, transform_indices = @transform_3, window_bounds = array<i64: 4, 64>}, {pipeline_mode = #tpu.pipeline_mode<synchronous>, transform_indices = @transform_4, window_bounds = array<i64: 1, 64>}, {transform_indices = @transform_5, window_bounds = array<i64: 8, 128>}]} {
    %c0 = arith.constant 0 : index
    %c0_0 = arith.constant 0 : index
    %c0_1 = arith.constant 0 : index
    %0 = vector.load %arg1[%c0, %c0_0, %c0_1] : memref<8x64x128xf32, #tpu.memory_space<vmem>>, vector<8x64x128xf32>
    %cst = arith.constant dense<0.000000e+00> : vector<8x64xf32>
    %1 = vector.multi_reduction <add>, %0, %cst [2] : vector<8x64x128xf32> to vector<8x64xf32>
    %cst_2 = arith.constant 1.280000e+02 : f32
    %2 = vector.broadcast %cst_2 : f32 to vector<8x64xf32>
    %3 = arith.divf %1, %2 : vector<8x64xf32>
    %c0_3 = arith.constant 0 : index
    %c0_4 = arith.constant 0 : index
    %4 = vector.load %arg2[%c0_3, %c0_4] : memref<64x4xf32, #tpu.memory_space<vmem>>, vector<64x4xf32>
    %cst_5 = arith.constant dense<0.000000e+00> : vector<8x4xf32>
    %5 = tpu.matmul %3, %4, %cst_5 {dimension_numbers = #tpu.dot_dimension_numbers<[1], [0], [0], [1], [0, 0, 1, 1], [], []>} : vector<8x64xf32>, vector<64x4xf32>, vector<8x4xf32> -> vector<8x4xf32>
    %c0_6 = arith.constant 0 : index
    %c0_7 = arith.constant 0 : index
    %6 = vector.load %arg3[%c0_6, %c0_7] : memref<1x4xf32, #tpu.memory_space<vmem>>, vector<1x4xf32>
    %7 = vector.broadcast %6 : vector<1x4xf32> to vector<8x4xf32>
    %8 = arith.addf %5, %7 : vector<8x4xf32>
    %cst_8 = arith.constant 0.000000e+00 : f32
    %9 = vector.broadcast %cst_8 : f32 to vector<8x4xf32>
    %10 = arith.maximumf %8, %9 : vector<8x4xf32>
    %c0_9 = arith.constant 0 : index
    %c0_10 = arith.constant 0 : index
    %11 = vector.load %arg4[%c0_9, %c0_10] : memref<4x64xf32, #tpu.memory_space<vmem>>, vector<4x64xf32>
    %cst_11 = arith.constant dense<0.000000e+00> : vector<8x64xf32>
    %12 = tpu.matmul %10, %11, %cst_11 {dimension_numbers = #tpu.dot_dimension_numbers<[1], [0], [0], [1], [0, 0, 1, 1], [], []>} : vector<8x4xf32>, vector<4x64xf32>, vector<8x64xf32> -> vector<8x64xf32>
    %c0_12 = arith.constant 0 : index
    %c0_13 = arith.constant 0 : index
    %13 = vector.load %arg5[%c0_12, %c0_13] : memref<1x64xf32, #tpu.memory_space<vmem>>, vector<1x64xf32>
    %14 = vector.broadcast %13 : vector<1x64xf32> to vector<8x64xf32>
    %15 = arith.addf %12, %14 : vector<8x64xf32>
    %cst_14 = arith.constant 0.000000e+00 : f32
    %16 = vector.broadcast %cst_14 : f32 to vector<8x64xf32>
    %17 = arith.subf %16, %15 : vector<8x64xf32>
    %18 = math.exp %17 : vector<8x64xf32>
    %cst_15 = arith.constant 1.000000e+00 : f32
    %19 = vector.broadcast %cst_15 : f32 to vector<8x64xf32>
    %20 = arith.addf %19, %18 : vector<8x64xf32>
    %21 = tpu.reciprocal %20 : vector<8x64xf32> -> vector<8x64xf32>
    %22 = vector.shape_cast %21 : vector<8x64xf32> to vector<8x64x1xf32>
    %23 = vector.broadcast %22 : vector<8x64x1xf32> to vector<8x64x128xf32>
    %24 = arith.mulf %0, %23 : vector<8x64x128xf32>
    %cst_16 = arith.constant dense<0.000000e+00> : vector<8x128xf32>
    %25 = vector.multi_reduction <add>, %24, %cst_16 [1] : vector<8x64x128xf32> to vector<8x128xf32>
    %c0_17 = arith.constant 0 : index
    %c0_18 = arith.constant 0 : index
    %26 = vector.load %arg6[%c0_17, %c0_18] : memref<8x128xf32, #tpu.memory_space<vmem>>, vector<8x128xf32>
    tpu.vector_store %arg6[%c0_17, %c0_18], %25 {strides = array<i32>} : memref<8x128xf32, #tpu.memory_space<vmem>>, vector<8x128xf32>,
    return
  }
  func.func @transform_0(%arg0: i32) -> (i32, i32, i32) {
    %c0_i32 = arith.constant 0 : i32
    %c0_i32_0 = arith.constant 0 : i32
    %c0_i32_1 = arith.constant 0 : i32
    return %arg0, %c0_i32, %c0_i32_0 : i32, i32, i32
  }
  func.func @transform_1(%arg0: i32) -> (i32, i32) {
    %c0_i32 = arith.constant 0 : i32
    %c0_i32_0 = arith.constant 0 : i32
    %c0_i32_1 = arith.constant 0 : i32
    return %c0_i32, %c0_i32_0 : i32, i32
  }
  func.func @transform_2(%arg0: i32) -> (i32, i32) {
    %c0_i32 = arith.constant 0 : i32
    %c0_i32_0 = arith.constant 0 : i32
    %c0_i32_1 = arith.constant 0 : i32
    return %c0_i32, %c0_i32_0 : i32, i32
  }
  func.func @transform_3(%arg0: i32) -> (i32, i32) {
    %c0_i32 = arith.constant 0 : i32
    %c0_i32_0 = arith.constant 0 : i32
    %c0_i32_1 = arith.constant 0 : i32
    return %c0_i32, %c0_i32_0 : i32, i32
  }
  func.func @transform_4(%arg0: i32) -> (i32, i32) {
    %c0_i32 = arith.constant 0 : i32
    %c0_i32_0 = arith.constant 0 : i32
    %c0_i32_1 = arith.constant 0 : i32
    return %c0_i32, %c0_i32_0 : i32, i32
  }
  func.func @transform_5(%arg0: i32) -> (i32, i32) {
    %c0_i32 = arith.constant 0 : i32
    %c0_i32_0 = arith.constant 0 : i32
    return %arg0, %c0_i32 : i32, i32
  }
}

</mosaic_0001>

<llo_original>
// kernel: channel_attention.1
$region0: #{channel_attention.1}
  #allocation0 [shape = 'u32[]', space=smem, size = 0x4, offset = 0x4, fixed_abs, tag = 'smem constant byte address 0x4 - core index']
  #allocation1 [shape = 'u32[144,128]{1,0:T(1,128)}', space=vmem, size = 0x12000, scoped, tag = 'internal scratch']
  %s0 = inlined_call_operand.hbm [shape: f32[16,64,128], index: 0, kind: input, shape index: {}]
  %s1 = inlined_call_operand.vmem [shape: f32[64,4], index: 1, kind: input, shape index: {}]
  %s2 = inlined_call_operand.vmem [shape: f32[1,4], index: 2, kind: input, shape index: {}]
  %s3 = inlined_call_operand.vmem [shape: f32[4,64], index: 3, kind: input, shape index: {}]
  %s4 = inlined_call_operand.vmem [shape: f32[1,64], index: 4, kind: input, shape index: {}]
  %s5 = inlined_call_operand.hbm [shape: f32[16,128], index: 5, kind: output, shape index: {}]
  %s6 = sld [smem:[#allocation0]]
  $region57: #{channel_attention.1} parent=0
    _
  %s8 = ssub.s32 1, %s6
  %s9 = scalar_select 0, %s8, %s6
  $region1: #{channel_attention.1} parent=0
    #allocation2 [shape = 'u8[524288]{0}', space=vmem, size = 0x80000, scoped, tag = 'input window, operand 0']
    #allocation3 [shape = 's32[2]{0}', space=sflag, size = 0x8, scoped, tag = 'scoped memory for channel_attention.1']
    #allocation4 [shape = 's32[2]{0}', space=sflag, size = 0x8, scoped, tag = 'scoped memory for channel_attention.1']
    #allocation5 [shape = 'u8[8192]{0}', space=vmem, size = 0x2000, scoped, tag = 'output window, operand 0']
    %10 = vsyncpa [#allocation3], 0
    %s11 = scalar_lea.sflag [#allocation3], 1
    %12 = vsyncpa %s11, 0
    %13 = vsyncpa [#allocation4], 0
    %s14 = scalar_lea.sflag [#allocation4], 1
    %15 = vsyncpa %s14, 0
    loop: start=0, step=1, limit=4
    $region2: #{channel_attention.1} parent=1 // loop_pre_header
      _
    $region3: #{channel_attention.1} parent=1 // loop_header
      %s17 = sphi 0, %s21
      %p18 = scmp.ge.s32.totalorder %s17, 4
      %s27 = sphi 0, %s29
      %s30 = sphi 0, %s27
      %s31 = sphi 0, %s30
      %s47 = sphi 0, %s31
      %s51 = sphi 0, %s51
      %s53 = sphi 0, %s51
      %s54 = sphi 0, %s53
      %s68 = sphi 0, %s54
      %s72 = sphi 0, %s72
      %s74 = sphi 0, %s72
      %s75 = sphi 0, %s74
      %s89 = sphi 0, %s75
      %s93 = sphi 0, %s93
      %s95 = sphi 0, %s93
      %s96 = sphi 0, %s95
      %s110 = sphi 0, %s96
      %s114 = sphi 0, %s114
      %s116 = sphi 0, %s114
      %s117 = sphi 0, %s116
      %s131 = sphi 0, %s117
      %s137 = sphi 0, %s139
      %s140 = sphi 0, %s137
      %s141 = sphi 0, %s140
      %s157 = sphi 0, %s141
    $region4: #{channel_attention.1} parent=1 // loop_header_branch
      %20 = sbr.rel (%p18) target = $region8
    $region5: #{channel_attention.1} parent=1 // loop_body
      %s22 = ssub.s32 %s17, 1
      %s23 = ssub.s32 %s17, 2
      %s24 = sadd.s32 %s17, 1
      %s25 = ssub.s32 %s17, %s24
      %p26 = scmp.eq.s32.totalorder %s25, 0
      %s28 = sadd.s32 %s27, 1
      %s29 = scalar_select %p26, %s27, %s28
      %p32 = pneg %p26
      %p33 = scmp.eq.s32.totalorder %s17, 1
      %p34 = por %p32, %p33
      %p35 = scmp.ne.s32.totalorder %s27, %s30
      %p36 = scmp.eq.s32.totalorder %s17, 0
      %p37 = por %p35, %p36
      %p38 = scmp.ne.s32.totalorder %s27, %s30
      %p39 = scmp.eq.s32.totalorder %s22, 1
      %p40 = por %p38, %p39
      %p41 = scmp.ne.s32.totalorder %s30, %s31
      %p42 = scmp.eq.s32.totalorder %s22, 0
      %p43 = por %p41, %p42
      %p44 = scmp.ne.s32.totalorder %s30, %s31
      %p45 = scmp.eq.s32.totalorder %s23, 1
      %p46 = por %p44, %p45
      %p48 = scmp.ne.s32.totalorder %s31, %s47
      %p49 = scmp.eq.s32.totalorder %s23, 0
      %p50 = por %p48, %p49
      %s52 = sadd.s32 %s51, 1
      %p55 = scmp.eq.s32.totalorder %s17, 1
      %p56 = scmp.ne.s32.totalorder %s51, %s53
      %p57 = scmp.eq.s32.totalorder %s17, 0
      %p58 = por %p56, %p57
      %p59 = scmp.ne.s32.totalorder %s51, %s53
      %p60 = scmp.eq.s32.totalorder %s22, 1
      %p61 = por %p59, %p60
      %p62 = scmp.ne.s32.totalorder %s53, %s54
      %p63 = scmp.eq.s32.totalorder %s22, 0
      %p64 = por %p62, %p63
      %p65 = scmp.ne.s32.totalorder %s53, %s54
      %p66 = scmp.eq.s32.totalorder %s23, 1
      %p67 = por %p65, %p66
      %p69 = scmp.ne.s32.totalorder %s54, %s68
      %p70 = scmp.eq.s32.totalorder %s23, 0
      %p71 = por %p69, %p70
      %s73 = sadd.s32 %s72, 1
      %p76 = scmp.eq.s32.totalorder %s17, 1
      %p77 = scmp.ne.s32.totalorder %s72, %s74
      %p78 = scmp.eq.s32.totalorder %s17, 0
      %p79 = por %p77, %p78
      %p80 = scmp.ne.s32.totalorder %s72, %s74
      %p81 = scmp.eq.s32.totalorder %s22, 1
      %p82 = por %p80, %p81
      %p83 = scmp.ne.s32.totalorder %s74, %s75
      %p84 = scmp.eq.s32.totalorder %s22, 0
      %p85 = por %p83, %p84
      %p86 = scmp.ne.s32.totalorder %s74, %s75
      %p87 = scmp.eq.s32.totalorder %s23, 1
      %p88 = por %p86, %p87
      %p90 = scmp.ne.s32.totalorder %s75, %s89
      %p91 = scmp.eq.s32.totalorder %s23, 0
      %p92 = por %p90, %p91
      %s94 = sadd.s32 %s93, 1
      %p97 = scmp.eq.s32.totalorder %s17, 1
      %p98 = scmp.ne.s32.totalorder %s93, %s95
      %p99 = scmp.eq.s32.totalorder %s17, 0
      %p100 = por %p98, %p99
      %p101 = scmp.ne.s32.totalorder %s93, %s95
      %p102 = scmp.eq.s32.totalorder %s22, 1
      %p103 = por %p101, %p102
      %p104 = scmp.ne.s32.totalorder %s95, %s96
      %p105 = scmp.eq.s32.totalorder %s22, 0
      %p106 = por %p104, %p105
      %p107 = scmp.ne.s32.totalorder %s95, %s96
      %p108 = scmp.eq.s32.totalorder %s23, 1
      %p109 = por %p107, %p108
      %p111 = scmp.ne.s32.totalorder %s96, %s110
      %p112 = scmp.eq.s32.totalorder %s23, 0
      %p113 = por %p111, %p112
      %s115 = sadd.s32 %s114, 1
      %p118 = scmp.eq.s32.totalorder %s17, 1
      %p119 = scmp.ne.s32.totalorder %s114, %s116
      %p120 = scmp.eq.s32.totalorder %s17, 0
      %p121 = por %p119, %p120
      %p122 = scmp.ne.s32.totalorder %s114, %s116
      %p123 = scmp.eq.s32.totalorder %s22, 1
      %p124 = por %p122, %p123
      %p125 = scmp.ne.s32.totalorder %s116, %s117
      %p126 = scmp.eq.s32.totalorder %s22, 0
      %p127 = por %p125, %p126
      %p128 = scmp.ne.s32.totalorder %s116, %s117
      %p129 = scmp.eq.s32.totalorder %s23, 1
      %p130 = por %p128, %p129
      %p132 = scmp.ne.s32.totalorder %s117, %s131
      %p133 = scmp.eq.s32.totalorder %s23, 0
      %p134 = por %p132, %p133
      %s135 = ssub.s32 %s17, %s24
      %p136 = scmp.eq.s32.totalorder %s135, 0
      %s138 = sadd.s32 %s137, 1
      %s139 = scalar_select %p136, %s137, %s138
      %p142 = pneg %p136
      %p143 = scmp.eq.s32.totalorder %s17, 1
      %p144 = por %p142, %p143
      %p145 = scmp.ne.s32.totalorder %s137, %s140
      %p146 = scmp.eq.s32.totalorder %s17, 0
      %p147 = por %p145, %p146
      %p148 = scmp.ne.s32.totalorder %s137, %s140
      %p149 = scmp.eq.s32.totalorder %s22, 1
      %p150 = por %p148, %p149
      %p151 = scmp.ne.s32.totalorder %s140, %s141
      %p152 = scmp.eq.s32.totalorder %s22, 0
      %p153 = por %p151, %p152
      %p154 = scmp.ne.s32.totalorder %s140, %s141
      %p155 = scmp.eq.s32.totalorder %s23, 1
      %p156 = por %p154, %p155
      %p158 = scmp.ne.s32.totalorder %s141, %s157
      %p159 = scmp.eq.s32.totalorder %s23, 0
      %p160 = por %p158, %p159
      %p161 = scmp.le.s32.totalorder 1, %s17
      %p162 = scmp.lt.s32.totalorder %s17, 3
      %p163 = pnand %p161, %p162
      %p164 = pneg %p163
      // Predicated region
      $region9: #{channel_attention.1} parent=5 // pred_check
        _
      $region10: #{channel_attention.1} parent=5 // pred_check_branch
        %166 = sbr.rel (%p163) target = $region12
      $region11: #{channel_attention.1} parent=5 // pred_region
        %s167 = ssub.s32 %s17, 1
        // Predicated region
        $region13: #{channel_attention.1} parent=11 // pred_check
          %p168 = pneg %p64
        $region14: #{channel_attention.1} parent=11 // pred_check_branch
          %170 = sbr.rel (%p168) target = $region16
        $region15: #{channel_attention.1} parent=11 // pred_region
          _
        $region16: #{channel_attention.1} parent=11 // pred_fallthru
          _
        // Predicated region
        $region17: #{channel_attention.1} parent=11 // pred_check
          %p171 = pneg %p85
        $region18: #{channel_attention.1} parent=11 // pred_check_branch
          %173 = sbr.rel (%p171) target = $region20
        $region19: #{channel_attention.1} parent=11 // pred_region
          _
        $region20: #{channel_attention.1} parent=11 // pred_fallthru
          _
        // Predicated region
        $region21: #{channel_attention.1} parent=11 // pred_check
          %p174 = pneg %p106
        $region22: #{channel_attention.1} parent=11 // pred_check_branch
          %176 = sbr.rel (%p174) target = $region24
        $region23: #{channel_attention.1} parent=11 // pred_region
          _
        $region24: #{channel_attention.1} parent=11 // pred_fallthru
          _
        // Predicated region
        $region25: #{channel_attention.1} parent=11 // pred_check
          %p177 = pneg %p127
        $region26: #{channel_attention.1} parent=11 // pred_check_branch
          %179 = sbr.rel (%p177) target = $region28
        $region27: #{channel_attention.1} parent=11 // pred_region
          _
        $region28: #{channel_attention.1} parent=11 // pred_fallthru
          _
      $region12: #{channel_attention.1} parent=5 // pred_fallthru
        _
      %p180 = scmp.lt.s32.totalorder %s17, 2
      // Predicated region
      $region29: #{channel_attention.1} parent=5 // pred_check
        %p181 = pneg %p180
      $region30: #{channel_attention.1} parent=5 // pred_check_branch
        %183 = sbr.rel (%p181) target = $region32
      $region31: #{channel_attention.1} parent=5 // pred_region
        // Predicated region
        $region33: #{channel_attention.1} parent=31 // pred_check
          %p184 = pneg %p37
        $region34: #{channel_attention.1} parent=31 // pred_check_branch
          %186 = sbr.rel (%p184) target = $region36
        $region35: #{channel_attention.1} parent=31 // pred_region
          %s187 = sand.u32 %s27, 1
          %s188 = scalar_lea.sflag [#allocation3], %s187
          %s189 = sand.u32 %s27, 1
          %s190 = smul.addr %s189, 512
          %s191 = scalar_lea.vmem [#allocation2], %s190
          %s192 = smul.u32 8, %s17
          %s194 = ssub.s32 8192, 8192
          %195 = vsyncadd %s188, %s194
          %s196 = smul.addr %s192, 8
          %s197 = smul.addr %s196, 128
          %s198 = scalar_lea.hbm %s0, %s197
          %s199 = sshll.u32 %s191, 4
          %s200 = int_to_ptr.vmem [resolvable:$true] %s199
          %205 = dma.hbm_to_vmem [thread:$0]  %s198, 8192, %s200, %s188, 128, 128, 8
        $region36: #{channel_attention.1} parent=31 // pred_fallthru
          _
      $region32: #{channel_attention.1} parent=5 // pred_fallthru
        _
      %p206 = scmp.le.s32.totalorder 1, %s17
      %p207 = scmp.lt.s32.totalorder %s17, 3
      %p208 = pnand %p206, %p207
      %p209 = pneg %p208
      // Predicated region
      $region37: #{channel_attention.1} parent=5 // pred_check
        _
      $region38: #{channel_attention.1} parent=5 // pred_check_branch
        %211 = sbr.rel (%p208) target = $region40
      $region39: #{channel_attention.1} parent=5 // pred_region
        %s212 = ssub.s32 %s17, 1
        %s213 = sand.u32 %s30, 1
        %s214 = scalar_lea.sflag [#allocation3], %s213
        %s215 = sand.u32 %s30, 1
        %s216 = smul.addr %s215, 512
        %s217 = scalar_lea.vmem [#allocation2], %s216
        // Predicated region
        $region41: #{channel_attention.1} parent=39 // pred_check
          %p218 = pneg %p43
        $region42: #{channel_attention.1} parent=39 // pred_check_branch
          %220 = sbr.rel (%p218) target = $region44
        $region43: #{channel_attention.1} parent=39 // pred_region
          %221 = dma.done %s214, 8192
        $region44: #{channel_attention.1} parent=39 // pred_fallthru
          _
        %s222 = sand.u32 %s30, 1
        %s223 = scalar_lea.sflag [#allocation3], %s222
        %s224 = sand.u32 %s30, 1
        %s225 = smul.addr %s224, 512
        %s226 = scalar_lea.vmem [#allocation2], %s225
        %p227 = pneg %p43
        %p228 = pneg %p40
        %p229 = pneg %p64
        %p230 = pneg %p61
        %p231 = pneg %p85
        %p232 = pneg %p82
        %p233 = pneg %p106
        %p234 = pneg %p103
        %p235 = pneg %p127
        %p236 = pneg %p124
        %p237 = pneg %p153
        %p238 = pneg %p150
        %s239 = sand.u32 %s140, 1
        %s240 = scalar_lea.sflag [#allocation4], %s239
        %s241 = sand.u32 %s140, 1
        %s242 = smul.addr %s241, 8
        %s243 = scalar_lea.vmem [#allocation5], %s242
        %s244 = smul.u32 8, %s22
        %v245 = vld [vmem:[%s217] sm:$0xff]
        %v246 = vld [vmem:[%s217 + $0x8] sm:$0xff]
        %v247 = vld [vmem:[%s217 + $0x10] sm:$0xff]
        %v248 = vld [vmem:[%s217 + $0x18] sm:$0xff]
        %v249 = vld [vmem:[%s217 + $0x20] sm:$0xff]
        %v250 = vld [vmem:[%s217 + $0x28] sm:$0xff]
        %v251 = vld [vmem:[%s217 + $0x30] sm:$0xff]
        %v252 = vld [vmem:[%s217 + $0x38] sm:$0xff]
        %v253 = vld [vmem:[%s217 + $0x40] sm:$0xff]
        %v254 = vld [vmem:[%s217 + $0x48] sm:$0xff]
        %v255 = vld [vmem:[%s217 + $0x50] sm:$0xff]
        %v256 = vld [vmem:[%s217 + $0x58] sm:$0xff]
        %v257 = vld [vmem:[%s217 + $0x60] sm:$0xff]
        %v258 = vld [vmem:[%s217 + $0x68] sm:$0xff]
        %v259 = vld [vmem:[%s217 + $0x70] sm:$0xff]
        %v260 = vld [vmem:[%s217 + $0x78] sm:$0xff]
        %v261 = vld [vmem:[%s217 + $0x80] sm:$0xff]
        %v262 = vld [vmem:[%s217 + $0x88] sm:$0xff]
        %v263 = vld [vmem:[%s217 + $0x90] sm:$0xff]
        %v264 = vld [vmem:[%s217 + $0x98] sm:$0xff]
        %v265 = vld [vmem:[%s217 + $0xa0] sm:$0xff]
        %v266 = vld [vmem:[%s217 + $0xa8] sm:$0xff]
        %v267 = vld [vmem:[%s217 + $0xb0] sm:$0xff]
        %v268 = vld [vmem:[%s217 + $0xb8] sm:$0xff]
        %v269 = vld [vmem:[%s217 + $0xc0] sm:$0xff]
        %v270 = vld [vmem:[%s217 + $0xc8] sm:$0xff]
        %v271 = vld [vmem:[%s217 + $0xd0] sm:$0xff]
        %v272 = vld [vmem:[%s217 + $0xd8] sm:$0xff]
        %v273 = vld [vmem:[%s217 + $0xe0] sm:$0xff]
        %v274 = vld [vmem:[%s217 + $0xe8] sm:$0xff]
        %v275 = vld [vmem:[%s217 + $0xf0] sm:$0xff]
        %v276 = vld [vmem:[%s217 + $0xf8] sm:$0xff]
        %v277 = vld [vmem:[%s217 + $0x100] sm:$0xff]
        %v278 = vld [vmem:[%s217 + $0x108] sm:$0xff]
        %v279 = vld [vmem:[%s217 + $0x110] sm:$0xff]
        %v280 = vld [vmem:[%s217 + $0x118] sm:$0xff]
        %v281 = vld [vmem:[%s217 + $0x120] sm:$0xff]
        %v282 = vld [vmem:[%s217 + $0x128] sm:$0xff]
        %v283 = vld [vmem:[%s217 + $0x130] sm:$0xff]
        %v284 = vld [vmem:[%s217 + $0x138] sm:$0xff]
        %v285 = vld [vmem:[%s217 + $0x140] sm:$0xff]
        %v286 = vld [vmem:[%s217 + $0x148] sm:$0xff]
        %v287 = vld [vmem:[%s217 + $0x150] sm:$0xff]
        %v288 = vld [vmem:[%s217 + $0x158] sm:$0xff]
        %v289 = vld [vmem:[%s217 + $0x160] sm:$0xff]
        %v290 = vld [vmem:[%s217 + $0x168] sm:$0xff]
        %v291 = vld [vmem:[%s217 + $0x170] sm:$0xff]
        %v292 = vld [vmem:[%s217 + $0x178] sm:$0xff]
        %v293 = vld [vmem:[%s217 + $0x180] sm:$0xff]
        %v294 = vld [vmem:[%s217 + $0x188] sm:$0xff]
        %v295 = vld [vmem:[%s217 + $0x190] sm:$0xff]
        %v296 = vld [vmem:[%s217 + $0x198] sm:$0xff]
        %v297 = vld [vmem:[%s217 + $0x1a0] sm:$0xff]
        %v298 = vld [vmem:[%s217 + $0x1a8] sm:$0xff]
        %v299 = vld [vmem:[%s217 + $0x1b0] sm:$0xff]
        %v300 = vld [vmem:[%s217 + $0x1b8] sm:$0xff]
        %v301 = vld [vmem:[%s217 + $0x1c0] sm:$0xff]
        %v302 = vld [vmem:[%s217 + $0x1c8] sm:$0xff]
        %v303 = vld [vmem:[%s217 + $0x1d0] sm:$0xff]
        %v304 = vld [vmem:[%s217 + $0x1d8] sm:$0xff]
        %v305 = vld [vmem:[%s217 + $0x1e0] sm:$0xff]
        %v306 = vld [vmem:[%s217 + $0x1e8] sm:$0xff]
        %v307 = vld [vmem:[%s217 + $0x1f0] sm:$0xff]
        %v308 = vld [vmem:[%s217 + $0x1f8] sm:$0xff]
        %309 = vadd.xlane.f32.xlu0 %v245
        %v310 = vpop.xlane.xlu0 %309
        %311 = vadd.xlane.f32.xlu0 %v246
        %v312 = vpop.xlane.xlu0 %311
        %313 = vadd.xlane.f32.xlu0 %v247
        %v314 = vpop.xlane.xlu0 %313
        %315 = vadd.xlane.f32.xlu0 %v248
        %v316 = vpop.xlane.xlu0 %315
        %317 = vadd.xlane.f32.xlu0 %v249
        %v318 = vpop.xlane.xlu0 %317
        %319 = vadd.xlane.f32.xlu0 %v250
        %v320 = vpop.xlane.xlu0 %319
        %321 = vadd.xlane.f32.xlu0 %v251
        %v322 = vpop.xlane.xlu0 %321
        %323 = vadd.xlane.f32.xlu0 %v252
        %v324 = vpop.xlane.xlu0 %323
        %325 = vadd.xlane.f32.xlu0 %v253
        %v326 = vpop.xlane.xlu0 %325
        %327 = vadd.xlane.f32.xlu0 %v254
        %v328 = vpop.xlane.xlu0 %327
        %329 = vadd.xlane.f32.xlu0 %v255
        %v330 = vpop.xlane.xlu0 %329
        %331 = vadd.xlane.f32.xlu0 %v256
        %v332 = vpop.xlane.xlu0 %331
        %333 = vadd.xlane.f32.xlu0 %v257
        %v334 = vpop.xlane.xlu0 %333
        %335 = vadd.xlane.f32.xlu0 %v258
        %v336 = vpop.xlane.xlu0 %335
        %337 = vadd.xlane.f32.xlu0 %v259
        %v338 = vpop.xlane.xlu0 %337
        %339 = vadd.xlane.f32.xlu0 %v260
        %v340 = vpop.xlane.xlu0 %339
        %341 = vadd.xlane.f32.xlu0 %v261
        %v342 = vpop.xlane.xlu0 %341
        %343 = vadd.xlane.f32.xlu0 %v262
        %v344 = vpop.xlane.xlu0 %343
        %345 = vadd.xlane.f32.xlu0 %v263
        %v346 = vpop.xlane.xlu0 %345
        %347 = vadd.xlane.f32.xlu0 %v264
        %v348 = vpop.xlane.xlu0 %347
        %349 = vadd.xlane.f32.xlu0 %v265
        %v350 = vpop.xlane.xlu0 %349
        %351 = vadd.xlane.f32.xlu0 %v266
        %v352 = vpop.xlane.xlu0 %351
        %353 = vadd.xlane.f32.xlu0 %v267
        %v354 = vpop.xlane.xlu0 %353
        %355 = vadd.xlane.f32.xlu0 %v268
        %v356 = vpop.xlane.xlu0 %355
        %357 = vadd.xlane.f32.xlu0 %v269
        %v358 = vpop.xlane.xlu0 %357
        %359 = vadd.xlane.f32.xlu0 %v270
        %v360 = vpop.xlane.xlu0 %359
        %361 = vadd.xlane.f32.xlu0 %v271
        %v362 = vpop.xlane.xlu0 %361
        %363 = vadd.xlane.f32.xlu0 %v272
        %v364 = vpop.xlane.xlu0 %363
        %365 = vadd.xlane.f32.xlu0 %v273
        %v366 = vpop.xlane.xlu0 %365
        %367 = vadd.xlane.f32.xlu0 %v274
        %v368 = vpop.xlane.xlu0 %367
        %369 = vadd.xlane.f32.xlu0 %v275
        %v370 = vpop.xlane.xlu0 %369
        %371 = vadd.xlane.f32.xlu0 %v276
        %v372 = vpop.xlane.xlu0 %371
        %373 = vadd.xlane.f32.xlu0 %v277
        %v374 = vpop.xlane.xlu0 %373
        %375 = vadd.xlane.f32.xlu0 %v278
        %v376 = vpop.xlane.xlu0 %375
        %377 = vadd.xlane.f32.xlu0 %v279
        %v378 = vpop.xlane.xlu0 %377
        %379 = vadd.xlane.f32.xlu0 %v280
        %v380 = vpop.xlane.xlu0 %379
        %381 = vadd.xlane.f32.xlu0 %v281
        %v382 = vpop.xlane.xlu0 %381
        %383 = vadd.xlane.f32.xlu0 %v282
        %v384 = vpop.xlane.xlu0 %383
        %385 = vadd.xlane.f32.xlu0 %v283
        %v386 = vpop.xlane.xlu0 %385
        %387 = vadd.xlane.f32.xlu0 %v284
        %v388 = vpop.xlane.xlu0 %387
        %389 = vadd.xlane.f32.xlu0 %v285
        %v390 = vpop.xlane.xlu0 %389
        %391 = vadd.xlane.f32.xlu0 %v286
        %v392 = vpop.xlane.xlu0 %391
        %393 = vadd.xlane.f32.xlu0 %v287
        %v394 = vpop.xlane.xlu0 %393
        %395 = vadd.xlane.f32.xlu0 %v288
        %v396 = vpop.xlane.xlu0 %395
        %397 = vadd.xlane.f32.xlu0 %v289
        %v398 = vpop.xlane.xlu0 %397
        %399 = vadd.xlane.f32.xlu0 %v290
        %v400 = vpop.xlane.xlu0 %399
        %401 = vadd.xlane.f32.xlu0 %v291
        %v402 = vpop.xlane.xlu0 %401
        %403 = vadd.xlane.f32.xlu0 %v292
        %v404 = vpop.xlane.xlu0 %403
        %405 = vadd.xlane.f32.xlu0 %v293
        %v406 = vpop.xlane.xlu0 %405
        %407 = vadd.xlane.f32.xlu0 %v294
        %v408 = vpop.xlane.xlu0 %407
        %409 = vadd.xlane.f32.xlu0 %v295
        %v410 = vpop.xlane.xlu0 %409
        %411 = vadd.xlane.f32.xlu0 %v296
        %v412 = vpop.xlane.xlu0 %411
        %413 = vadd.xlane.f32.xlu0 %v297
        %v414 = vpop.xlane.xlu0 %413
        %415 = vadd.xlane.f32.xlu0 %v298
        %v416 = vpop.xlane.xlu0 %415
        %417 = vadd.xlane.f32.xlu0 %v299
        %v418 = vpop.xlane.xlu0 %417
        %419 = vadd.xlane.f32.xlu0 %v300
        %v420 = vpop.xlane.xlu0 %419
        %421 = vadd.xlane.f32.xlu0 %v301
        %v422 = vpop.xlane.xlu0 %421
        %423 = vadd.xlane.f32.xlu0 %v302
        %v424 = vpop.xlane.xlu0 %423
        %425 = vadd.xlane.f32.xlu0 %v303
        %v426 = vpop.xlane.xlu0 %425
        %427 = vadd.xlane.f32.xlu0 %v304
        %v428 = vpop.xlane.xlu0 %427
        %429 = vadd.xlane.f32.xlu0 %v305
        %v430 = vpop.xlane.xlu0 %429
        %431 = vadd.xlane.f32.xlu0 %v306
        %v432 = vpop.xlane.xlu0 %431
        %433 = vadd.xlane.f32.xlu0 %v307
        %v434 = vpop.xlane.xlu0 %433
        %435 = vadd.xlane.f32.xlu0 %v308
        %v436 = vpop.xlane.xlu0 %435
        %v437 = vrcp.pop 128.0
        %v438 = vmul.f32 %v310, %v437
        %v439 = vmul.f32 %v312, %v437
        %v440 = vmul.f32 %v314, %v437
        %v441 = vmul.f32 %v316, %v437
        %v442 = vmul.f32 %v318, %v437
        %v443 = vmul.f32 %v320, %v437
        %v444 = vmul.f32 %v322, %v437
        %v445 = vmul.f32 %v324, %v437
        %v446 = vmul.f32 %v326, %v437
        %v447 = vmul.f32 %v328, %v437
        %v448 = vmul.f32 %v330, %v437
        %v449 = vmul.f32 %v332, %v437
        %v450 = vmul.f32 %v334, %v437
        %v451 = vmul.f32 %v336, %v437
        %v452 = vmul.f32 %v338, %v437
        %v453 = vmul.f32 %v340, %v437
        %v454 = vmul.f32 %v342, %v437
        %v455 = vmul.f32 %v344, %v437
        %v456 = vmul.f32 %v346, %v437
        %v457 = vmul.f32 %v348, %v437
        %v458 = vmul.f32 %v350, %v437
        %v459 = vmul.f32 %v352, %v437
        %v460 = vmul.f32 %v354, %v437
        %v461 = vmul.f32 %v356, %v437
        %v462 = vmul.f32 %v358, %v437
        %v463 = vmul.f32 %v360, %v437
        %v464 = vmul.f32 %v362, %v437
        %v465 = vmul.f32 %v364, %v437
        %v466 = vmul.f32 %v366, %v437
        %v467 = vmul.f32 %v368, %v437
        %v468 = vmul.f32 %v370, %v437
        %v469 = vmul.f32 %v372, %v437
        %v470 = vmul.f32 %v374, %v437
        %v471 = vmul.f32 %v376, %v437
        %v472 = vmul.f32 %v378, %v437
        %v473 = vmul.f32 %v380, %v437
        %v474 = vmul.f32 %v382, %v437
        %v475 = vmul.f32 %v384, %v437
        %v476 = vmul.f32 %v386, %v437
        %v477 = vmul.f32 %v388, %v437
        %v478 = vmul.f32 %v390, %v437
        %v479 = vmul.f32 %v392, %v437
        %v480 = vmul.f32 %v394, %v437
        %v481 = vmul.f32 %v396, %v437
        %v482 = vmul.f32 %v398, %v437
        %v483 = vmul.f32 %v400, %v437
        %v484 = vmul.f32 %v402, %v437
        %v485 = vmul.f32 %v404, %v437
        %v486 = vmul.f32 %v406, %v437
        %v487 = vmul.f32 %v408, %v437
        %v488 = vmul.f32 %v410, %v437
        %v489 = vmul.f32 %v412, %v437
        %v490 = vmul.f32 %v414, %v437
        %v491 = vmul.f32 %v416, %v437
        %v492 = vmul.f32 %v418, %v437
        %v493 = vmul.f32 %v420, %v437
        %v494 = vmul.f32 %v422, %v437
        %v495 = vmul.f32 %v424, %v437
        %v496 = vmul.f32 %v426, %v437
        %v497 = vmul.f32 %v428, %v437
        %v498 = vmul.f32 %v430, %v437
        %v499 = vmul.f32 %v432, %v437
        %v500 = vmul.f32 %v434, %v437
        %v501 = vmul.f32 %v436, %v437
        %v502 = vld [vmem:[%s1] sm:$0xff]
        %v503 = vld [vmem:[%s1 + $0x8] sm:$0xff]
        %v504 = vld [vmem:[%s1 + $0x10] sm:$0xff]
        %v505 = vld [vmem:[%s1 + $0x18] sm:$0xff]
        %v506 = vld [vmem:[%s1 + $0x20] sm:$0xff]
        %v507 = vld [vmem:[%s1 + $0x28] sm:$0xff]
        %v508 = vld [vmem:[%s1 + $0x30] sm:$0xff]
        %v509 = vld [vmem:[%s1 + $0x38] sm:$0xff]
        %v510 = vld [vmem:[%s2] sm:$0x1]
        %v512 = vlaneseq
        %v513 = vshrl.u32 %v512, 7
        %v514 = vsub.s32 0, %v513
        %v515 = vrot.slane %v510, %v514
        %v581 = vlaneseq
        %v582 = vand.u32 %v581, 127
        %v583 = vlaneseq
        %v584 = vshrl.u32 %v583, 7
        %v585 = vsub.s32 %v582, %v584
        %v586 = vrot.slane %v438, %v585
        %v587 = vadd.s32 %v582, 4294967288
        %v588 = vlaneseq
        %v589 = vshrl.u32 %v588, 7
        %v590 = vsub.s32 %v587, %v589
        %v591 = vrot.slane %v439, %v590
        %vm592 = vcmask 130112
        %v593 = vsel %vm592, %v591, %v586
        %v594 = vadd.s32 %v582, 4294967280
        %v595 = vlaneseq
        %v596 = vshrl.u32 %v595, 7
        %v597 = vsub.s32 %v594, %v596
        %v598 = vrot.slane %v440, %v597
        %vm599 = vcmask 195712
        %v600 = vsel %vm599, %v598, %v593
        %v601 = vadd.s32 %v582, 4294967272
        %v602 = vlaneseq
        %v603 = vshrl.u32 %v602, 7
        %v604 = vsub.s32 %v601, %v603
        %v605 = vrot.slane %v441, %v604
        %vm606 = vcmask 261312
        %v607 = vsel %vm606, %v605, %v600
        %v608 = vadd.s32 %v582, 4294967264
        %v609 = vlaneseq
        %v610 = vshrl.u32 %v609, 7
        %v611 = vsub.s32 %v608, %v610
        %v612 = vrot.slane %v442, %v611
        %vm613 = vcmask 326912
        %v614 = vsel %vm613, %v612, %v607
        %v615 = vadd.s32 %v582, 4294967256
        %v616 = vlaneseq
        %v617 = vshrl.u32 %v616, 7
        %v618 = vsub.s32 %v615, %v617
        %v619 = vrot.slane %v443, %v618
        %vm620 = vcmask 392512
        %v621 = vsel %vm620, %v619, %v614
        %v622 = vadd.s32 %v582, 4294967248
        %v623 = vlaneseq
        %v624 = vshrl.u32 %v623, 7
        %v625 = vsub.s32 %v622, %v624
        %v626 = vrot.slane %v444, %v625
        %vm627 = vcmask 458112
        %v628 = vsel %vm627, %v626, %v621
        %v629 = vadd.s32 %v582, 4294967240
        %v630 = vlaneseq
        %v631 = vshrl.u32 %v630, 7
        %v632 = vsub.s32 %v629, %v631
        %v633 = vrot.slane %v445, %v632
        %vm634 = vcmask 523712
        %v635 = vsel %vm634, %v633, %v628
        %v636 = vlaneseq
        %v637 = vshrl.u32 %v636, 7
        %v638 = vsub.s32 %v582, %v637
        %v639 = vrot.slane %v446, %v638
        %v640 = vlaneseq
        %v641 = vshrl.u32 %v640, 7
        %v642 = vsub.s32 %v587, %v641
        %v643 = vrot.slane %v447, %v642
        %v644 = vsel %vm592, %v643, %v639
        %v645 = vlaneseq
        %v646 = vshrl.u32 %v645, 7
        %v647 = vsub.s32 %v594, %v646
        %v648 = vrot.slane %v448, %v647
        %v649 = vsel %vm599, %v648, %v644
        %v650 = vlaneseq
        %v651 = vshrl.u32 %v650, 7
        %v652 = vsub.s32 %v601, %v651
        %v653 = vrot.slane %v449, %v652
        %v654 = vsel %vm606, %v653, %v649
        %v655 = vlaneseq
        %v656 = vshrl.u32 %v655, 7
        %v657 = vsub.s32 %v608, %v656
        %v658 = vrot.slane %v450, %v657
        %v659 = vsel %vm613, %v658, %v654
        %v660 = vlaneseq
        %v661 = vshrl.u32 %v660, 7
        %v662 = vsub.s32 %v615, %v661
        %v663 = vrot.slane %v451, %v662
        %v664 = vsel %vm620, %v663, %v659
        %v665 = vlaneseq
        %v666 = vshrl.u32 %v665, 7
        %v667 = vsub.s32 %v622, %v666
        %v668 = vrot.slane %v452, %v667
        %v669 = vsel %vm627, %v668, %v664
        %v670 = vlaneseq
        %v671 = vshrl.u32 %v670, 7
        %v672 = vsub.s32 %v629, %v671
        %v673 = vrot.slane %v453, %v672
        %v674 = vsel %vm634, %v673, %v669
        %v675 = vlaneseq
        %v676 = vshrl.u32 %v675, 7
        %v677 = vsub.s32 %v582, %v676
        %v678 = vrot.slane %v454, %v677
        %v679 = vlaneseq
        %v680 = vshrl.u32 %v679, 7
        %v681 = vsub.s32 %v587, %v680
        %v682 = vrot.slane %v455, %v681
        %v683 = vsel %vm592, %v682, %v678
        %v684 = vlaneseq
        %v685 = vshrl.u32 %v684, 7
        %v686 = vsub.s32 %v594, %v685
        %v687 = vrot.slane %v456, %v686
        %v688 = vsel %vm599, %v687, %v683
        %v689 = vlaneseq
        %v690 = vshrl.u32 %v689, 7
        %v691 = vsub.s32 %v601, %v690
        %v692 = vrot.slane %v457, %v691
        %v693 = vsel %vm606, %v692, %v688
        %v694 = vlaneseq
        %v695 = vshrl.u32 %v694, 7
        %v696 = vsub.s32 %v608, %v695
        %v697 = vrot.slane %v458, %v696
        %v698 = vsel %vm613, %v697, %v693
        %v699 = vlaneseq
        %v700 = vshrl.u32 %v699, 7
        %v701 = vsub.s32 %v615, %v700
        %v702 = vrot.slane %v459, %v701
        %v703 = vsel %vm620, %v702, %v698
        %v704 = vlaneseq
        %v705 = vshrl.u32 %v704, 7
        %v706 = vsub.s32 %v622, %v705
        %v707 = vrot.slane %v460, %v706
        %v708 = vsel %vm627, %v707, %v703
        %v709 = vlaneseq
        %v710 = vshrl.u32 %v709, 7
        %v711 = vsub.s32 %v629, %v710
        %v712 = vrot.slane %v461, %v711
        %v713 = vsel %vm634, %v712, %v708
        %v714 = vlaneseq
        %v715 = vshrl.u32 %v714, 7
        %v716 = vsub.s32 %v582, %v715
        %v717 = vrot.slane %v462, %v716
        %v718 = vlaneseq
        %v719 = vshrl.u32 %v718, 7
        %v720 = vsub.s32 %v587, %v719
        %v721 = vrot.slane %v463, %v720
        %v722 = vsel %vm592, %v721, %v717
        %v723 = vlaneseq
        %v724 = vshrl.u32 %v723, 7
        %v725 = vsub.s32 %v594, %v724
        %v726 = vrot.slane %v464, %v725
        %v727 = vsel %vm599, %v726, %v722
        %v728 = vlaneseq
        %v729 = vshrl.u32 %v728, 7
        %v730 = vsub.s32 %v601, %v729
        %v731 = vrot.slane %v465, %v730
        %v732 = vsel %vm606, %v731, %v727
        %v733 = vlaneseq
        %v734 = vshrl.u32 %v733, 7
        %v735 = vsub.s32 %v608, %v734
        %v736 = vrot.slane %v466, %v735
        %v737 = vsel %vm613, %v736, %v732
        %v738 = vlaneseq
        %v739 = vshrl.u32 %v738, 7
        %v740 = vsub.s32 %v615, %v739
        %v741 = vrot.slane %v467, %v740
        %v742 = vsel %vm620, %v741, %v737
        %v743 = vlaneseq
        %v744 = vshrl.u32 %v743, 7
        %v745 = vsub.s32 %v622, %v744
        %v746 = vrot.slane %v468, %v745
        %v747 = vsel %vm627, %v746, %v742
        %v748 = vlaneseq
        %v749 = vshrl.u32 %v748, 7
        %v750 = vsub.s32 %v629, %v749
        %v751 = vrot.slane %v469, %v750
        %v752 = vsel %vm634, %v751, %v747
        %v753 = vlaneseq
        %v754 = vshrl.u32 %v753, 7
        %v755 = vsub.s32 %v582, %v754
        %v756 = vrot.slane %v470, %v755
        %v757 = vlaneseq
        %v758 = vshrl.u32 %v757, 7
        %v759 = vsub.s32 %v587, %v758
        %v760 = vrot.slane %v471, %v759
        %v761 = vsel %vm592, %v760, %v756
        %v762 = vlaneseq
        %v763 = vshrl.u32 %v762, 7
        %v764 = vsub.s32 %v594, %v763
        %v765 = vrot.slane %v472, %v764
        %v766 = vsel %vm599, %v765, %v761
        %v767 = vlaneseq
        %v768 = vshrl.u32 %v767, 7
        %v769 = vsub.s32 %v601, %v768
        %v770 = vrot.slane %v473, %v769
        %v771 = vsel %vm606, %v770, %v766
        %v772 = vlaneseq
        %v773 = vshrl.u32 %v772, 7
        %v774 = vsub.s32 %v608, %v773
        %v775 = vrot.slane %v474, %v774
        %v776 = vsel %vm613, %v775, %v771
        %v777 = vlaneseq
        %v778 = vshrl.u32 %v777, 7
        %v779 = vsub.s32 %v615, %v778
        %v780 = vrot.slane %v475, %v779
        %v781 = vsel %vm620, %v780, %v776
        %v782 = vlaneseq
        %v783 = vshrl.u32 %v782, 7
        %v784 = vsub.s32 %v622, %v783
        %v785 = vrot.slane %v476, %v784
        %v786 = vsel %vm627, %v785, %v781
        %v787 = vlaneseq
        %v788 = vshrl.u32 %v787, 7
        %v789 = vsub.s32 %v629, %v788
        %v790 = vrot.slane %v477, %v789
        %v791 = vsel %vm634, %v790, %v786
        %v792 = vlaneseq
        %v793 = vshrl.u32 %v792, 7
        %v794 = vsub.s32 %v582, %v793
        %v795 = vrot.slane %v478, %v794
        %v796 = vlaneseq
        %v797 = vshrl.u32 %v796, 7
        %v798 = vsub.s32 %v587, %v797
        %v799 = vrot.slane %v479, %v798
        %v800 = vsel %vm592, %v799, %v795
        %v801 = vlaneseq
        %v802 = vshrl.u32 %v801, 7
        %v803 = vsub.s32 %v594, %v802
        %v804 = vrot.slane %v480, %v803
        %v805 = vsel %vm599, %v804, %v800
        %v806 = vlaneseq
        %v807 = vshrl.u32 %v806, 7
        %v808 = vsub.s32 %v601, %v807
        %v809 = vrot.slane %v481, %v808
        %v810 = vsel %vm606, %v809, %v805
        %v811 = vlaneseq
        %v812 = vshrl.u32 %v811, 7
        %v813 = vsub.s32 %v608, %v812
        %v814 = vrot.slane %v482, %v813
        %v815 = vsel %vm613, %v814, %v810
        %v816 = vlaneseq
        %v817 = vshrl.u32 %v816, 7
        %v818 = vsub.s32 %v615, %v817
        %v819 = vrot.slane %v483, %v818
        %v820 = vsel %vm620, %v819, %v815
        %v821 = vlaneseq
        %v822 = vshrl.u32 %v821, 7
        %v823 = vsub.s32 %v622, %v822
        %v824 = vrot.slane %v484, %v823
        %v825 = vsel %vm627, %v824, %v820
        %v826 = vlaneseq
        %v827 = vshrl.u32 %v826, 7
        %v828 = vsub.s32 %v629, %v827
        %v829 = vrot.slane %v485, %v828
        %v830 = vsel %vm634, %v829, %v825
        %v831 = vlaneseq
        %v832 = vshrl.u32 %v831, 7
        %v833 = vsub.s32 %v582, %v832
        %v834 = vrot.slane %v486, %v833
        %v835 = vlaneseq
        %v836 = vshrl.u32 %v835, 7
        %v837 = vsub.s32 %v587, %v836
        %v838 = vrot.slane %v487, %v837
        %v839 = vsel %vm592, %v838, %v834
        %v840 = vlaneseq
        %v841 = vshrl.u32 %v840, 7
        %v842 = vsub.s32 %v594, %v841
        %v843 = vrot.slane %v488, %v842
        %v844 = vsel %vm599, %v843, %v839
        %v845 = vlaneseq
        %v846 = vshrl.u32 %v845, 7
        %v847 = vsub.s32 %v601, %v846
        %v848 = vrot.slane %v489, %v847
        %v849 = vsel %vm606, %v848, %v844
        %v850 = vlaneseq
        %v851 = vshrl.u32 %v850, 7
        %v852 = vsub.s32 %v608, %v851
        %v853 = vrot.slane %v490, %v852
        %v854 = vsel %vm613, %v853, %v849
        %v855 = vlaneseq
        %v856 = vshrl.u32 %v855, 7
        %v857 = vsub.s32 %v615, %v856
        %v858 = vrot.slane %v491, %v857
        %v859 = vsel %vm620, %v858, %v854
        %v860 = vlaneseq
        %v861 = vshrl.u32 %v860, 7
        %v862 = vsub.s32 %v622, %v861
        %v863 = vrot.slane %v492, %v862
        %v864 = vsel %vm627, %v863, %v859
        %v865 = vlaneseq
        %v866 = vshrl.u32 %v865, 7
        %v867 = vsub.s32 %v629, %v866
        %v868 = vrot.slane %v493, %v867
        %v869 = vsel %vm634, %v868, %v864
        %v870 = vlaneseq
        %v871 = vshrl.u32 %v870, 7
        %v872 = vsub.s32 %v582, %v871
        %v873 = vrot.slane %v494, %v872
        %v874 = vlaneseq
        %v875 = vshrl.u32 %v874, 7
        %v876 = vsub.s32 %v587, %v875
        %v877 = vrot.slane %v495, %v876
        %v878 = vsel %vm592, %v877, %v873
        %v879 = vlaneseq
        %v880 = vshrl.u32 %v879, 7
        %v881 = vsub.s32 %v594, %v880
        %v882 = vrot.slane %v496, %v881
        %v883 = vsel %vm599, %v882, %v878
        %v884 = vlaneseq
        %v885 = vshrl.u32 %v884, 7
        %v886 = vsub.s32 %v601, %v885
        %v887 = vrot.slane %v497, %v886
        %v888 = vsel %vm606, %v887, %v883
        %v889 = vlaneseq
        %v890 = vshrl.u32 %v889, 7
        %v891 = vsub.s32 %v608, %v890
        %v892 = vrot.slane %v498, %v891
        %v893 = vsel %vm613, %v892, %v888
        %v894 = vlaneseq
        %v895 = vshrl.u32 %v894, 7
        %v896 = vsub.s32 %v615, %v895
        %v897 = vrot.slane %v499, %v896
        %v898 = vsel %vm620, %v897, %v893
        %v899 = vlaneseq
        %v900 = vshrl.u32 %v899, 7
        %v901 = vsub.s32 %v622, %v900
        %v902 = vrot.slane %v500, %v901
        %v903 = vsel %vm627, %v902, %v898
        %v904 = vlaneseq
        %v905 = vshrl.u32 %v904, 7
        %v906 = vsub.s32 %v629, %v905
        %v907 = vrot.slane %v501, %v906
        %v908 = vsel %vm634, %v907, %v903
        %vm909 = vcmask 1041409
        %v910 = vsel %vm909, %v674, %v635
        %vm911 = vcmask 1042434
        %v912 = vsel %vm911, %v713, %v910
        %vm913 = vcmask 1043459
        %v914 = vsel %vm913, %v752, %v912
        %vm915 = vcmask 1044484
        %v916 = vsel %vm915, %v791, %v914
        %vm917 = vcmask 1045509
        %v918 = vsel %vm917, %v830, %v916
        %vm919 = vcmask 1046534
        %v920 = vsel %vm919, %v869, %v918
        %vm921 = vcmask 1047559
        %v922 = vsel %vm921, %v908, %v920
        %vm923 = vcmask 523264
        %v924 = vsel %vm923, %v922, 0
        %926 = vmatprep.subr.mxu0 0.0
        %927 = vmatpush1.msra.mxu0 %v502
        %928 = vmatprep.subr.mxu0 0.0
        %929 = vmatpush1.msra.mxu0 %v503
        %930 = vmatprep.subr.mxu0 0.0
        %931 = vmatpush1.msra.mxu0 %v504
        %932 = vmatprep.subr.mxu0 0.0
        %933 = vmatpush1.msra.mxu0 %v505
        %934 = vmatprep.subr.mxu0 0.0
        %935 = vmatpush1.msra.mxu0 %v506
        %936 = vmatprep.subr.mxu0 0.0
        %937 = vmatpush1.msra.mxu0 %v507
        %938 = vmatprep.subr.mxu0 0.0
        %939 = vmatpush1.msra.mxu0 %v508
        %940 = vmatprep.subr.mxu0 0.0
        %941 = vmatpush1.msra.mxu0 %v509
        %942 = vmatprep.subr.mxu0 0.0
        %943 = vmatpush1.msra.mxu0 0.0
        %944 = vmatprep.subr.mxu0 0.0
        %945 = vmatpush1.msra.mxu0 0.0
        %946 = vmatprep.subr.mxu0 0.0
        %947 = vmatpush1.msra.mxu0 0.0
        %948 = vmatprep.subr.mxu0 0.0
        %949 = vmatpush1.msra.mxu0 0.0
        %950 = vmatprep.subr.mxu0 0.0
        %951 = vmatpush1.msra.mxu0 0.0
        %952 = vmatprep.subr.mxu0 0.0
        %953 = vmatpush1.msra.mxu0 0.0
        %954 = vmatprep.subr.mxu0 0.0
        %955 = vmatpush1.msra.mxu0 0.0
        %956 = vmatprep.subr.mxu0 0.0
        %957 = vmatpush1.msra.mxu0 0.0
        %958 = vmatprep.subr.mxu0 0.0
        %959 = vmatpush1.msra.mxu0 0.0
        %960 = vmatprep.subr.mxu0 0.0
        %961 = vmatpush1.msra.mxu0 0.0
        %962 = vmatprep.subr.mxu0 0.0
        %963 = vmatpush1.msra.mxu0 0.0
        %964 = vmatprep.subr.mxu0 0.0
        %965 = vmatpush1.msra.mxu0 0.0
        %966 = vmatprep.subr.mxu0 0.0
        %967 = vmatpush1.msra.mxu0 0.0
        %968 = vmatprep.subr.mxu0 0.0
        %969 = vmatpush1.msra.mxu0 0.0
        %970 = vmatprep.subr.mxu0 0.0
        %971 = vmatpush1.msra.mxu0 0.0
        %972 = vmatprep.subr.mxu0 0.0
        %973 = vmatpush1.msra.mxu0 0.0
        %974 = vmatprep.subr.mxu0 0.0
        %975 = vmatpush1.msra.mxu0 0.0
        %976 = vmatprep.subr.mxu0 0.0
        %977 = vmatpush1.msra.mxu0 0.0
        %978 = vmatprep.subr.mxu0 0.0
        %979 = vmatpush1.msra.mxu0 0.0
        %980 = vmatprep.subr.mxu0 0.0
        %981 = vmatpush1.msra.mxu0 0.0
        %982 = vmatprep.subr.mxu0 0.0
        %983 = vmatpush1.msra.mxu0 0.0
        %984 = vmatprep.subr.mxu0 0.0
        %985 = vmatpush1.msra.mxu0 0.0
        %986 = vmatprep.subr.mxu0 0.0
        %987 = vmatpush1.msra.mxu0 0.0
        %988 = vmatprep.subr.mxu0 0.0
        %989 = vmatpush1.msra.mxu0 0.0
        %990 = vmatprep.mubr.f32.mxu0 0.0
        %991 = vmatmul.mubr.f32.gmra.mrb[0].mxu0 %v924
        %v992 = vpop.f32.mrb[0].mxu0
        %v993 = vadd.f32 %v515, %v992
        %v994 = vpop.f32.mrb[0].mxu0
        %995 = vdwg.mxu0
        %v996 = vmax.f32 %v993, 0.0
        %v997 = vld [vmem:[%s3] sm:$0xf]
        %v998 = vld [vmem:[%s4] sm:$0x1]
        %v1000 = vlaneseq
        %v1001 = vshrl.u32 %v1000, 7
        %v1002 = vsub.s32 0, %v1001
        %v1003 = vrot.slane %v998, %v1002
        %vm1005 = vcmask 31744
        %v1007 = vsel %vm1005, %v996, 0
        %vm1009 = vcmask 1043456
        %v1011 = vsel %vm1009, %v997, 0
        %1013 = vmatprep.subr.mxu0 0.0
        %1014 = vmatpush1.msra.mxu0 %v1011
        %1015 = vmatprep.subr.mxu0 0.0
        %1016 = vmatpush1.msra.mxu0 0.0
        %1017 = vmatprep.subr.mxu0 0.0
        %1018 = vmatpush1.msra.mxu0 0.0
        %1019 = vmatprep.subr.mxu0 0.0
        %1020 = vmatpush1.msra.mxu0 0.0
        %1021 = vmatprep.subr.mxu0 0.0
        %1022 = vmatpush1.msra.mxu0 0.0
        %1023 = vmatprep.subr.mxu0 0.0
        %1024 = vmatpush1.msra.mxu0 0.0
        %1025 = vmatprep.subr.mxu0 0.0
        %1026 = vmatpush1.msra.mxu0 0.0
        %1027 = vmatprep.subr.mxu0 0.0
        %1028 = vmatpush1.msra.mxu0 0.0
        %1029 = vmatprep.subr.mxu0 0.0
        %1030 = vmatpush1.msra.mxu0 0.0
        %1031 = vmatprep.subr.mxu0 0.0
        %1032 = vmatpush1.msra.mxu0 0.0
        %1033 = vmatprep.subr.mxu0 0.0
        %1034 = vmatpush1.msra.mxu0 0.0
        %1035 = vmatprep.subr.mxu0 0.0
        %1036 = vmatpush1.msra.mxu0 0.0
        %1037 = vmatprep.subr.mxu0 0.0
        %1038 = vmatpush1.msra.mxu0 0.0
        %1039 = vmatprep.subr.mxu0 0.0
        %1040 = vmatpush1.msra.mxu0 0.0
        %1041 = vmatprep.subr.mxu0 0.0
        %1042 = vmatpush1.msra.mxu0 0.0
        %1043 = vmatprep.subr.mxu0 0.0
        %1044 = vmatpush1.msra.mxu0 0.0
        %1045 = vmatprep.subr.mxu0 0.0
        %1046 = vmatpush1.msra.mxu0 0.0
        %1047 = vmatprep.subr.mxu0 0.0
        %1048 = vmatpush1.msra.mxu0 0.0
        %1049 = vmatprep.subr.mxu0 0.0
        %1050 = vmatpush1.msra.mxu0 0.0
        %1051 = vmatprep.subr.mxu0 0.0
        %1052 = vmatpush1.msra.mxu0 0.0
        %1053 = vmatprep.subr.mxu0 0.0
        %1054 = vmatpush1.msra.mxu0 0.0
        %1055 = vmatprep.subr.mxu0 0.0
        %1056 = vmatpush1.msra.mxu0 0.0
        %1057 = vmatprep.subr.mxu0 0.0
        %1058 = vmatpush1.msra.mxu0 0.0
        %1059 = vmatprep.subr.mxu0 0.0
        %1060 = vmatpush1.msra.mxu0 0.0
        %1061 = vmatprep.subr.mxu0 0.0
        %1062 = vmatpush1.msra.mxu0 0.0
        %1063 = vmatprep.subr.mxu0 0.0
        %1064 = vmatpush1.msra.mxu0 0.0
        %1065 = vmatprep.subr.mxu0 0.0
        %1066 = vmatpush1.msra.mxu0 0.0
        %1067 = vmatprep.subr.mxu0 0.0
        %1068 = vmatpush1.msra.mxu0 0.0
        %1069 = vmatprep.subr.mxu0 0.0
        %1070 = vmatpush1.msra.mxu0 0.0
        %1071 = vmatprep.subr.mxu0 0.0
        %1072 = vmatpush1.msra.mxu0 0.0
        %1073 = vmatprep.subr.mxu0 0.0
        %1074 = vmatpush1.msra.mxu0 0.0
        %1075 = vmatprep.subr.mxu0 0.0
        %1076 = vmatpush1.msra.mxu0 0.0
        %1077 = vmatprep.mubr.f32.mxu0 0.0
        %1078 = vmatmul.mubr.f32.gmra.mrb[0].mxu0 %v1007
        %v1079 = vpop.f32.mrb[0].mxu0
        %v1080 = vadd.f32 %v1003, %v1079
        %v1081 = vpop.f32.mrb[0].mxu0
        %1082 = vdwg.mxu0
        %v1083 = vsub.f32 0.0, %v1080
        %v1084 = vmul.f32 %v1083, 1.442695
        %v1085 = vpow.pop %v1084
        %v1086 = vadd.f32 %v1085, 1.0
        %v1087 = vrcp.pop %v1086
        %v1088 = vlaneseq
        %v1089 = vshrl.u32 %v1088, 7
        %v1090 = vsub.s32 0, %v1089
        %v1091 = vrot.slane %v1087, %v1090
        %1093 = vbcast.lane.b32.xlu0 %v1091, 256
        %v1094 = vpop.permute.xlu0 %1093
        %s1096 = sor.u32 256, 8
        %1097 = vbcast.lane.b32.xlu0 %v1091, %s1096
        %v1098 = vpop.permute.xlu0 %1097
        %s1100 = sor.u32 256, 16
        %1101 = vbcast.lane.b32.xlu0 %v1091, %s1100
        %v1102 = vpop.permute.xlu0 %1101
        %s1104 = sor.u32 256, 24
        %1105 = vbcast.lane.b32.xlu0 %v1091, %s1104
        %v1106 = vpop.permute.xlu0 %1105
        %s1108 = sor.u32 256, 32
        %1109 = vbcast.lane.b32.xlu0 %v1091, %s1108
        %v1110 = vpop.permute.xlu0 %1109
        %s1112 = sor.u32 256, 40
        %1113 = vbcast.lane.b32.xlu0 %v1091, %s1112
        %v1114 = vpop.permute.xlu0 %1113
        %s1116 = sor.u32 256, 48
        %1117 = vbcast.lane.b32.xlu0 %v1091, %s1116
        %v1118 = vpop.permute.xlu0 %1117
        %s1120 = sor.u32 256, 56
        %1121 = vbcast.lane.b32.xlu0 %v1091, %s1120
        %v1122 = vpop.permute.xlu0 %1121
        %v1123 = vlaneseq
        %v1124 = vshrl.u32 %v1123, 7
        %v1125 = vsub.s32 1, %v1124
        %v1126 = vrot.slane %v1087, %v1125
        %1128 = vbcast.lane.b32.xlu0 %v1126, 256
        %v1129 = vpop.permute.xlu0 %1128
        %s1131 = sor.u32 256, 8
        %1132 = vbcast.lane.b32.xlu0 %v1126, %s1131
        %v1133 = vpop.permute.xlu0 %1132
        %s1135 = sor.u32 256, 16
        %1136 = vbcast.lane.b32.xlu0 %v1126, %s1135
        %v1137 = vpop.permute.xlu0 %1136
        %s1139 = sor.u32 256, 24
        %1140 = vbcast.lane.b32.xlu0 %v1126, %s1139
        %v1141 = vpop.permute.xlu0 %1140
        %s1143 = sor.u32 256, 32
        %1144 = vbcast.lane.b32.xlu0 %v1126, %s1143
        %v1145 = vpop.permute.xlu0 %1144
        %s1147 = sor.u32 256, 40
        %1148 = vbcast.lane.b32.xlu0 %v1126, %s1147
        %v1149 = vpop.permute.xlu0 %1148
        %s1151 = sor.u32 256, 48
        %1152 = vbcast.lane.b32.xlu0 %v1126, %s1151
        %v1153 = vpop.permute.xlu0 %1152
        %s1155 = sor.u32 256, 56
        %1156 = vbcast.lane.b32.xlu0 %v1126, %s1155
        %v1157 = vpop.permute.xlu0 %1156
        %v1158 = vlaneseq
        %v1159 = vshrl.u32 %v1158, 7
        %v1160 = vsub.s32 2, %v1159
        %v1161 = vrot.slane %v1087, %v1160
        %1163 = vbcast.lane.b32.xlu0 %v1161, 256
        %v1164 = vpop.permute.xlu0 %1163
        %s1166 = sor.u32 256, 8
        %1167 = vbcast.lane.b32.xlu0 %v1161, %s1166
        %v1168 = vpop.permute.xlu0 %1167
        %s1170 = sor.u32 256, 16
        %1171 = vbcast.lane.b32.xlu0 %v1161, %s1170
        %v1172 = vpop.permute.xlu0 %1171
        %s1174 = sor.u32 256, 24
        %1175 = vbcast.lane.b32.xlu0 %v1161, %s1174
        %v1176 = vpop.permute.xlu0 %1175
        %s1178 = sor.u32 256, 32
        %1179 = vbcast.lane.b32.xlu0 %v1161, %s1178
        %v1180 = vpop.permute.xlu0 %1179
        %s1182 = sor.u32 256, 40
        %1183 = vbcast.lane.b32.xlu0 %v1161, %s1182
        %v1184 = vpop.permute.xlu0 %1183
        %s1186 = sor.u32 256, 48
        %1187 = vbcast.lane.b32.xlu0 %v1161, %s1186
        %v1188 = vpop.permute.xlu0 %1187
        %s1190 = sor.u32 256, 56
        %1191 = vbcast.lane.b32.xlu0 %v1161, %s1190
        %v1192 = vpop.permute.xlu0 %1191
        %v1193 = vlaneseq
        %v1194 = vshrl.u32 %v1193, 7
        %v1195 = vsub.s32 3, %v1194
        %v1196 = vrot.slane %v1087, %v1195
        %1198 = vbcast.lane.b32.xlu0 %v1196, 256
        %v1199 = vpop.permute.xlu0 %1198
        %s1201 = sor.u32 256, 8
        %1202 = vbcast.lane.b32.xlu0 %v1196, %s1201
        %v1203 = vpop.permute.xlu0 %1202
        %s1205 = sor.u32 256, 16
        %1206 = vbcast.lane.b32.xlu0 %v1196, %s1205
        %v1207 = vpop.permute.xlu0 %1206
        %s1209 = sor.u32 256, 24
        %1210 = vbcast.lane.b32.xlu0 %v1196, %s1209
        %v1211 = vpop.permute.xlu0 %1210
        %s1213 = sor.u32 256, 32
        %1214 = vbcast.lane.b32.xlu0 %v1196, %s1213
        %v1215 = vpop.permute.xlu0 %1214
        %s1217 = sor.u32 256, 40
        %1218 = vbcast.lane.b32.xlu0 %v1196, %s1217
        %v1219 = vpop.permute.xlu0 %1218
        %s1221 = sor.u32 256, 48
        %1222 = vbcast.lane.b32.xlu0 %v1196, %s1221
        %v1223 = vpop.permute.xlu0 %1222
        %s1225 = sor.u32 256, 56
        %1226 = vbcast.lane.b32.xlu0 %v1196, %s1225
        %v1227 = vpop.permute.xlu0 %1226
        %v1228 = vlaneseq
        %v1229 = vshrl.u32 %v1228, 7
        %v1230 = vsub.s32 4, %v1229
        %v1231 = vrot.slane %v1087, %v1230
        %1233 = vbcast.lane.b32.xlu0 %v1231, 256
        %v1234 = vpop.permute.xlu0 %1233
        %s1236 = sor.u32 256, 8
        %1237 = vbcast.lane.b32.xlu0 %v1231, %s1236
        %v1238 = vpop.permute.xlu0 %1237
        %s1240 = sor.u32 256, 16
        %1241 = vbcast.lane.b32.xlu0 %v1231, %s1240
        %v1242 = vpop.permute.xlu0 %1241
        %s1244 = sor.u32 256, 24
        %1245 = vbcast.lane.b32.xlu0 %v1231, %s1244
        %v1246 = vpop.permute.xlu0 %1245
        %s1248 = sor.u32 256, 32
        %1249 = vbcast.lane.b32.xlu0 %v1231, %s1248
        %v1250 = vpop.permute.xlu0 %1249
        %s1252 = sor.u32 256, 40
        %1253 = vbcast.lane.b32.xlu0 %v1231, %s1252
        %v1254 = vpop.permute.xlu0 %1253
        %s1256 = sor.u32 256, 48
        %1257 = vbcast.lane.b32.xlu0 %v1231, %s1256
        %v1258 = vpop.permute.xlu0 %1257
        %s1260 = sor.u32 256, 56
        %1261 = vbcast.lane.b32.xlu0 %v1231, %s1260
        %v1262 = vpop.permute.xlu0 %1261
        %v1263 = vlaneseq
        %v1264 = vshrl.u32 %v1263, 7
        %v1265 = vsub.s32 5, %v1264
        %v1266 = vrot.slane %v1087, %v1265
        %1268 = vbcast.lane.b32.xlu0 %v1266, 256
        %v1269 = vpop.permute.xlu0 %1268
        %s1271 = sor.u32 256, 8
        %1272 = vbcast.lane.b32.xlu0 %v1266, %s1271
        %v1273 = vpop.permute.xlu0 %1272
        %s1275 = sor.u32 256, 16
        %1276 = vbcast.lane.b32.xlu0 %v1266, %s1275
        %v1277 = vpop.permute.xlu0 %1276
        %s1279 = sor.u32 256, 24
        %1280 = vbcast.lane.b32.xlu0 %v1266, %s1279
        %v1281 = vpop.permute.xlu0 %1280
        %s1283 = sor.u32 256, 32
        %1284 = vbcast.lane.b32.xlu0 %v1266, %s1283
        %v1285 = vpop.permute.xlu0 %1284
        %s1287 = sor.u32 256, 40
        %1288 = vbcast.lane.b32.xlu0 %v1266, %s1287
        %v1289 = vpop.permute.xlu0 %1288
        %s1291 = sor.u32 256, 48
        %1292 = vbcast.lane.b32.xlu0 %v1266, %s1291
        %v1293 = vpop.permute.xlu0 %1292
        %s1295 = sor.u32 256, 56
        %1296 = vbcast.lane.b32.xlu0 %v1266, %s1295
        %v1297 = vpop.permute.xlu0 %1296
        %v1298 = vlaneseq
        %v1299 = vshrl.u32 %v1298, 7
        %v1300 = vsub.s32 6, %v1299
        %v1301 = vrot.slane %v1087, %v1300
        %1303 = vbcast.lane.b32.xlu0 %v1301, 256
        %v1304 = vpop.permute.xlu0 %1303
        %s1306 = sor.u32 256, 8
        %1307 = vbcast.lane.b32.xlu0 %v1301, %s1306
        %v1308 = vpop.permute.xlu0 %1307
        %s1310 = sor.u32 256, 16
        %1311 = vbcast.lane.b32.xlu0 %v1301, %s1310
        %v1312 = vpop.permute.xlu0 %1311
        %s1314 = sor.u32 256, 24
        %1315 = vbcast.lane.b32.xlu0 %v1301, %s1314
        %v1316 = vpop.permute.xlu0 %1315
        %s1318 = sor.u32 256, 32
        %1319 = vbcast.lane.b32.xlu0 %v1301, %s1318
        %v1320 = vpop.permute.xlu0 %1319
        %s1322 = sor.u32 256, 40
        %1323 = vbcast.lane.b32.xlu0 %v1301, %s1322
        %v1324 = vpop.permute.xlu0 %1323
        %s1326 = sor.u32 256, 48
        %1327 = vbcast.lane.b32.xlu0 %v1301, %s1326
        %v1328 = vpop.permute.xlu0 %1327
        %s1330 = sor.u32 256, 56
        %1331 = vbcast.lane.b32.xlu0 %v1301, %s1330
        %v1332 = vpop.permute.xlu0 %1331
        %v1333 = vlaneseq
        %v1334 = vshrl.u32 %v1333, 7
        %v1335 = vsub.s32 7, %v1334
        %v1336 = vrot.slane %v1087, %v1335
        %1338 = vbcast.lane.b32.xlu0 %v1336, 256
        %v1339 = vpop.permute.xlu0 %1338
        %s1341 = sor.u32 256, 8
        %1342 = vbcast.lane.b32.xlu0 %v1336, %s1341
        %v1343 = vpop.permute.xlu0 %1342
        %s1345 = sor.u32 256, 16
        %1346 = vbcast.lane.b32.xlu0 %v1336, %s1345
        %v1347 = vpop.permute.xlu0 %1346
        %s1349 = sor.u32 256, 24
        %1350 = vbcast.lane.b32.xlu0 %v1336, %s1349
        %v1351 = vpop.permute.xlu0 %1350
        %s1353 = sor.u32 256, 32
        %1354 = vbcast.lane.b32.xlu0 %v1336, %s1353
        %v1355 = vpop.permute.xlu0 %1354
        %s1357 = sor.u32 256, 40
        %1358 = vbcast.lane.b32.xlu0 %v1336, %s1357
        %v1359 = vpop.permute.xlu0 %1358
        %s1361 = sor.u32 256, 48
        %1362 = vbcast.lane.b32.xlu0 %v1336, %s1361
        %v1363 = vpop.permute.xlu0 %1362
        %s1365 = sor.u32 256, 56
        %1366 = vbcast.lane.b32.xlu0 %v1336, %s1365
        %v1367 = vpop.permute.xlu0 %1366
        %v1368 = vmul.f32 %v245, %v1094
        %v1369 = vmul.f32 %v246, %v1098
        %v1370 = vmul.f32 %v247, %v1102
        %v1371 = vmul.f32 %v248, %v1106
        %v1372 = vmul.f32 %v249, %v1110
        %v1373 = vmul.f32 %v250, %v1114
        %v1374 = vmul.f32 %v251, %v1118
        %v1375 = vmul.f32 %v252, %v1122
        %v1376 = vmul.f32 %v253, %v1129
        %v1377 = vmul.f32 %v254, %v1133
        %v1378 = vmul.f32 %v255, %v1137
        %v1379 = vmul.f32 %v256, %v1141
        %v1380 = vmul.f32 %v257, %v1145
        %v1381 = vmul.f32 %v258, %v1149
        %v1382 = vmul.f32 %v259, %v1153
        %v1383 = vmul.f32 %v260, %v1157
        %v1384 = vmul.f32 %v261, %v1164
        %v1385 = vmul.f32 %v262, %v1168
        %v1386 = vmul.f32 %v263, %v1172
        %v1387 = vmul.f32 %v264, %v1176
        %v1388 = vmul.f32 %v265, %v1180
        %v1389 = vmul.f32 %v266, %v1184
        %v1390 = vmul.f32 %v267, %v1188
        %v1391 = vmul.f32 %v268, %v1192
        %v1392 = vmul.f32 %v269, %v1199
        %v1393 = vmul.f32 %v270, %v1203
        %v1394 = vmul.f32 %v271, %v1207
        %v1395 = vmul.f32 %v272, %v1211
        %v1396 = vmul.f32 %v273, %v1215
        %v1397 = vmul.f32 %v274, %v1219
        %v1398 = vmul.f32 %v275, %v1223
        %v1399 = vmul.f32 %v276, %v1227
        %v1400 = vmul.f32 %v277, %v1234
        %v1401 = vmul.f32 %v278, %v1238
        %v1402 = vmul.f32 %v279, %v1242
        %v1403 = vmul.f32 %v280, %v1246
        %v1404 = vmul.f32 %v281, %v1250
        %v1405 = vmul.f32 %v282, %v1254
        %v1406 = vmul.f32 %v283, %v1258
        %v1407 = vmul.f32 %v284, %v1262
        %v1408 = vmul.f32 %v285, %v1269
        %v1409 = vmul.f32 %v286, %v1273
        %v1410 = vmul.f32 %v287, %v1277
        %v1411 = vmul.f32 %v288, %v1281
        %v1412 = vmul.f32 %v289, %v1285
        %v1413 = vmul.f32 %v290, %v1289
        %v1414 = vmul.f32 %v291, %v1293
        %v1415 = vmul.f32 %v292, %v1297
        %v1416 = vmul.f32 %v293, %v1304
        %v1417 = vmul.f32 %v294, %v1308
        %v1418 = vmul.f32 %v295, %v1312
        %v1419 = vmul.f32 %v296, %v1316
        %v1420 = vmul.f32 %v297, %v1320
        %v1421 = vmul.f32 %v298, %v1324
        %v1422 = vmul.f32 %v299, %v1328
        %v1423 = vmul.f32 %v300, %v1332
        %v1424 = vmul.f32 %v301, %v1339
        %v1425 = vmul.f32 %v302, %v1343
        %v1426 = vmul.f32 %v303, %v1347
        %v1427 = vmul.f32 %v304, %v1351
        %v1428 = vmul.f32 %v305, %v1355
        %v1429 = vmul.f32 %v306, %v1359
        %v1430 = vmul.f32 %v307, %v1363
        %v1431 = vmul.f32 %v308, %v1367
        %v1432 = vadd.f32 %v1368, %v1369
        %v1433 = vadd.f32 %v1432, %v1370
        %v1434 = vadd.f32 %v1433, %v1371
        %v1435 = vadd.f32 %v1434, %v1372
        %v1436 = vadd.f32 %v1435, %v1373
        %v1437 = vadd.f32 %v1436, %v1374
        %v1438 = vadd.f32 %v1437, %v1375
        %v1439 = vrot.slane %v1438, 4
        %v1440 = vadd.f32 %v1438, %v1439
        %v1441 = vrot.slane %v1440, 2
        %v1442 = vadd.f32 %v1440, %v1441
        %v1443 = vrot.slane %v1442, 1
        %v1444 = vadd.f32 %v1442, %v1443
        %v1445 = vadd.f32 %v1376, %v1377
        %v1446 = vadd.f32 %v1445, %v1378
        %v1447 = vadd.f32 %v1446, %v1379
        %v1448 = vadd.f32 %v1447, %v1380
        %v1449 = vadd.f32 %v1448, %v1381
        %v1450 = vadd.f32 %v1449, %v1382
        %v1451 = vadd.f32 %v1450, %v1383
        %v1452 = vrot.slane %v1451, 4
        %v1453 = vadd.f32 %v1451, %v1452
        %v1454 = vrot.slane %v1453, 2
        %v1455 = vadd.f32 %v1453, %v1454
        %v1456 = vrot.slane %v1455, 1
        %v1457 = vadd.f32 %v1455, %v1456
        %v1458 = vadd.f32 %v1384, %v1385
        %v1459 = vadd.f32 %v1458, %v1386
        %v1460 = vadd.f32 %v1459, %v1387
        %v1461 = vadd.f32 %v1460, %v1388
        %v1462 = vadd.f32 %v1461, %v1389
        %v1463 = vadd.f32 %v1462, %v1390
        %v1464 = vadd.f32 %v1463, %v1391
        %v1465 = vrot.slane %v1464, 4
        %v1466 = vadd.f32 %v1464, %v1465
        %v1467 = vrot.slane %v1466, 2
        %v1468 = vadd.f32 %v1466, %v1467
        %v1469 = vrot.slane %v1468, 1
        %v1470 = vadd.f32 %v1468, %v1469
        %v1471 = vadd.f32 %v1392, %v1393
        %v1472 = vadd.f32 %v1471, %v1394
        %v1473 = vadd.f32 %v1472, %v1395
        %v1474 = vadd.f32 %v1473, %v1396
        %v1475 = vadd.f32 %v1474, %v1397
        %v1476 = vadd.f32 %v1475, %v1398
        %v1477 = vadd.f32 %v1476, %v1399
        %v1478 = vrot.slane %v1477, 4
        %v1479 = vadd.f32 %v1477, %v1478
        %v1480 = vrot.slane %v1479, 2
        %v1481 = vadd.f32 %v1479, %v1480
        %v1482 = vrot.slane %v1481, 1
        %v1483 = vadd.f32 %v1481, %v1482
        %v1484 = vadd.f32 %v1400, %v1401
        %v1485 = vadd.f32 %v1484, %v1402
        %v1486 = vadd.f32 %v1485, %v1403
        %v1487 = vadd.f32 %v1486, %v1404
        %v1488 = vadd.f32 %v1487, %v1405
        %v1489 = vadd.f32 %v1488, %v1406
        %v1490 = vadd.f32 %v1489, %v1407
        %v1491 = vrot.slane %v1490, 4
        %v1492 = vadd.f32 %v1490, %v1491
        %v1493 = vrot.slane %v1492, 2
        %v1494 = vadd.f32 %v1492, %v1493
        %v1495 = vrot.slane %v1494, 1
        %v1496 = vadd.f32 %v1494, %v1495
        %v1497 = vadd.f32 %v1408, %v1409
        %v1498 = vadd.f32 %v1497, %v1410
        %v1499 = vadd.f32 %v1498, %v1411
        %v1500 = vadd.f32 %v1499, %v1412
        %v1501 = vadd.f32 %v1500, %v1413
        %v1502 = vadd.f32 %v1501, %v1414
        %v1503 = vadd.f32 %v1502, %v1415
        %v1504 = vrot.slane %v1503, 4
        %v1505 = vadd.f32 %v1503, %v1504
        %v1506 = vrot.slane %v1505, 2
        %v1507 = vadd.f32 %v1505, %v1506
        %v1508 = vrot.slane %v1507, 1
        %v1509 = vadd.f32 %v1507, %v1508
        %v1510 = vadd.f32 %v1416, %v1417
        %v1511 = vadd.f32 %v1510, %v1418
        %v1512 = vadd.f32 %v1511, %v1419
        %v1513 = vadd.f32 %v1512, %v1420
        %v1514 = vadd.f32 %v1513, %v1421
        %v1515 = vadd.f32 %v1514, %v1422
        %v1516 = vadd.f32 %v1515, %v1423
        %v1517 = vrot.slane %v1516, 4
        %v1518 = vadd.f32 %v1516, %v1517
        %v1519 = vrot.slane %v1518, 2
        %v1520 = vadd.f32 %v1518, %v1519
        %v1521 = vrot.slane %v1520, 1
        %v1522 = vadd.f32 %v1520, %v1521
        %v1523 = vadd.f32 %v1424, %v1425
        %v1524 = vadd.f32 %v1523, %v1426
        %v1525 = vadd.f32 %v1524, %v1427
        %v1526 = vadd.f32 %v1525, %v1428
        %v1527 = vadd.f32 %v1526, %v1429
        %v1528 = vadd.f32 %v1527, %v1430
        %v1529 = vadd.f32 %v1528, %v1431
        %v1530 = vrot.slane %v1529, 4
        %v1531 = vadd.f32 %v1529, %v1530
        %v1532 = vrot.slane %v1531, 2
        %v1533 = vadd.f32 %v1531, %v1532
        %v1534 = vrot.slane %v1533, 1
        %v1535 = vadd.f32 %v1533, %v1534
        %v1544 = vsel %vm909, %v1457, %v1444
        %v1545 = vsel %vm911, %v1470, %v1544
        %v1546 = vsel %vm913, %v1483, %v1545
        %v1547 = vsel %vm915, %v1496, %v1546
        %v1548 = vsel %vm917, %v1509, %v1547
        %v1549 = vsel %vm919, %v1522, %v1548
        %v1550 = vsel %vm921, %v1535, %v1549
        %1552 = vst [vmem:[%s243] sm:$0xff] %v1550
        %s1553 = sand.u32 %s140, 1
        %s1554 = scalar_lea.sflag [#allocation4], %s1553
        %s1555 = sand.u32 %s140, 1
        %s1556 = smul.addr %s1555, 8
        %s1557 = scalar_lea.vmem [#allocation5], %s1556
        // Predicated region
        $region45: #{channel_attention.1} parent=39 // pred_check
          %p1558 = pneg %p150
        $region46: #{channel_attention.1} parent=39 // pred_check_branch
          %1560 = sbr.rel (%p1558) target = $region48
        $region47: #{channel_attention.1} parent=39 // pred_region
          %s1562 = ssub.s32 128, 128
          %1563 = vsyncadd %s1554, %s1562
          %s1564 = smul.addr %s22, 128
          %s1565 = scalar_lea.hbm %s5, %s1564
          %s1567 = sshll.u32 %s1557, 4
          %s1568 = int_to_ptr.vmem [resolvable:$true] %s1567
          %1570 = dma.vmem_to_hbm [thread:$0]  %s1568, 128, %s1565, %s1554
        $region48: #{channel_attention.1} parent=39 // pred_fallthru
          _
      $region40: #{channel_attention.1} parent=5 // pred_fallthru
        _
      %p1571 = scmp.le.s32.totalorder 2, %s17
      // Predicated region
      $region49: #{channel_attention.1} parent=5 // pred_check
        %p1572 = pneg %p1571
      $region50: #{channel_attention.1} parent=5 // pred_check_branch
        %1574 = sbr.rel (%p1572) target = $region52
      $region51: #{channel_attention.1} parent=5 // pred_region
        %s1575 = ssub.s32 %s17, 2
        // Predicated region
        $region53: #{channel_attention.1} parent=51 // pred_check
          %p1576 = pneg %p156
        $region54: #{channel_attention.1} parent=51 // pred_check_branch
          %1578 = sbr.rel (%p1576) target = $region56
        $region55: #{channel_attention.1} parent=51 // pred_region
          %s1579 = sand.u32 %s141, 1
          %s1580 = scalar_lea.sflag [#allocation4], %s1579
          %s1581 = sand.u32 %s141, 1
          %s1582 = smul.addr %s1581, 8
          %s1583 = scalar_lea.vmem [#allocation5], %s1582
          %1584 = dma.done %s1580, 128
        $region56: #{channel_attention.1} parent=51 // pred_fallthru
          _
      $region52: #{channel_attention.1} parent=5 // pred_fallthru
        _
    $region6: #{channel_attention.1} parent=1 // loop_footer
      %s21 = sadd.s32 1, %s17
    $region7: #{channel_attention.1} parent=1 // loop_footer_branch
      %16 = sbr.rel target = $region3
    $region8: #{channel_attention.1} parent=1 // loop_exit
      _
    %1585 = vsyncpa [#allocation3], 1
    %s1586 = scalar_lea.sflag [#allocation3], 1
    %1587 = vsyncpa %s1586, 1
    %1588 = vsyncpa [#allocation4], 1
    %s1589 = scalar_lea.sflag [#allocation4], 1
    %1590 = vsyncpa %s1589, 1

</llo_original>
